<compile_context>
chip_gen: v5e
topology: v5e:2x2
jax: 0.10.0
libtpu: 0.0.40
codegen_flags: <defaults>
</compile_context>

<pallas_src>
import jax
import jax.numpy as jnp
from jax.experimental import pallas as pl
from jax.experimental.pallas import tpu as pltpu


def _avgpool2x2_kernel(x_ref, s_ref, o_ref):
    """2x2 / stride-2 average pool for one (image-channel, row-tile) block.

    x_ref: (1, OT, 2*W)  row-pair view: lanes [0:W) = even (top) rows,
                         lanes [W:2W) = odd (bottom) rows.
    s_ref: (W, W//2)     constant column-pair-sum matrix, S[k, j] = (k // 2 == j).
    o_ref: (1, OT, W//2) pooled output rows.
    """
    W = s_ref.shape[0]
    # Vertical pooling: top row + bottom row (two contiguous lane slices, VPU add).
    vsum = x_ref[0, :, :W] + x_ref[0, :, W:]                       # (OT, W)
    # Horizontal pooling on the MXU: (OT, W) @ (W, W//2), f32 accumulate.
    o_ref[0] = (jnp.dot(vsum, s_ref[...], preferred_element_type=jnp.float32)
                * 0.25).astype(o_ref.dtype)


def _pick_row_tile(h2):
    """Output-row tile: full extent if small, else a multiple of 8 dividing H//2."""
    if h2 <= 128:
        return h2
    for cand in (128, 64, 32, 16, 8):
        if h2 % cand == 0:
            return cand
    return h2


@jax.jit
def downsample_ex_forward(x_nchw):
    """Downsample_EX.forward == AvgPool2d(2, 2): (B, C, H, W) -> (B, C, H//2, W//2)."""
    B, C, H, W = x_nchw.shape
    assert H % 2 == 0 and W % 2 == 0, "AvgPool2d(2,2) kernel assumes even H and W"
    H2, W2 = H // 2, W // 2
    N = B * C

    # Free (contiguous, row-major-preserving) reshape: each pair of adjacent rows
    # becomes one lane-dense row of length 2*W.
    x_view = x_nchw.reshape(N, H2, 2 * W)

    # Constant lane-pair-sum matrix S[k, j] = 1 iff k // 2 == j.
    pool_s = (jnp.arange(W)[:, None] // 2 == jnp.arange(W2)[None, :]).astype(x_nchw.dtype)

    OT = _pick_row_tile(H2)

    out = pl.pallas_call(
        _avgpool2x2_kernel,
        out_shape=jax.ShapeDtypeStruct((N, H2, W2), x_nchw.dtype),
        grid=(N, H2 // OT),
        in_specs=[
            pl.BlockSpec((1, OT, 2 * W), lambda n, h: (n, h, 0)),
            pl.BlockSpec((W, W2), lambda n, h: (0, 0)),
        ],
        out_specs=pl.BlockSpec((1, OT, W2), lambda n, h: (n, h, 0)),
        compiler_params=pltpu.CompilerParams(
            dimension_semantics=("parallel", "parallel")),
    )(x_view, pool_s)

    # Free reshape back to NCHW.
    return out.reshape(B, C, H2, W2)


if __name__ == "__main__":
    B, n_feat, H, W = 2, 4, 16, 16

    key = jax.random.PRNGKey(0)
    x = jax.random.normal(key, (B, n_feat, H, W), dtype=jnp.float32)

    out = downsample_ex_forward(x)
    out = jax.block_until_ready(out)

    # Reference: pure-JAX 2x2 mean pool (matches nn.AvgPool2d(kernel_size=2, stride=2)).
    ref = jnp.mean(x.reshape(B, n_feat, H // 2, 2, W // 2, 2), axis=(3, 5))
    assert out.shape == (B, n_feat, H // 2, W // 2), out.shape
    assert jnp.allclose(out, ref, atol=1e-5, rtol=1e-5), float(jnp.max(jnp.abs(out - ref)))

    print("KERNEL_OK")
</pallas_src>

<mosaic_0001>
module attributes {stable_mosaic.version = 11 : i64} {
  func.func @_avgpool2x2_kernel(%arg0: i32, %arg1: i32, %arg2: memref<1x8x32xf32, #tpu.memory_space<vmem>>, %arg3: memref<16x8xf32, #tpu.memory_space<vmem>>, %arg4: memref<1x8x8xf32, #tpu.memory_space<vmem>>) attributes {dimension_semantics = [#tpu.dimension_semantics<parallel>, #tpu.dimension_semantics<parallel>], iteration_bounds = array<i64: 8, 1>, scalar_prefetch = 0 : i64, scratch_operands = 0 : i64, tpu.core_type = #tpu.core_type<tc>, window_params = [{transform_indices = @transform_0, window_bounds = array<i64: 1, 8, 32>}, {pipeline_mode = #tpu.pipeline_mode<synchronous>, transform_indices = @transform_1, window_bounds = array<i64: 16, 8>}, {transform_indices = @transform_2, window_bounds = array<i64: 1, 8, 8>}]} {
    %c0 = arith.constant 0 : index
    %c0_0 = arith.constant 0 : index
    %c0_1 = arith.constant 0 : index
    %0 = vector.load %arg2[%c0, %c0_0, %c0_1] : memref<1x8x32xf32, #tpu.memory_space<vmem>>, vector<1x8x16xf32>
    %1 = vector.shape_cast %0 : vector<1x8x16xf32> to vector<8x16xf32>
    %c0_2 = arith.constant 0 : index
    %c0_3 = arith.constant 0 : index
    %c16 = arith.constant 16 : index
    %2 = vector.load %arg2[%c0_2, %c0_3, %c16] : memref<1x8x32xf32, #tpu.memory_space<vmem>>, vector<1x8x16xf32>
    %3 = vector.shape_cast %2 : vector<1x8x16xf32> to vector<8x16xf32>
    %4 = arith.addf %1, %3 : vector<8x16xf32>
    %c0_4 = arith.constant 0 : index
    %c0_5 = arith.constant 0 : index
    %5 = vector.load %arg3[%c0_4, %c0_5] : memref<16x8xf32, #tpu.memory_space<vmem>>, vector<16x8xf32>
    %cst = arith.constant dense<0.000000e+00> : vector<8x8xf32>
    %6 = tpu.matmul %4, %5, %cst {dimension_numbers = #tpu.dot_dimension_numbers<[1], [0], [0], [1], [0, 0, 1, 1], [], []>} : vector<8x16xf32>, vector<16x8xf32>, vector<8x8xf32> -> vector<8x8xf32>
    %cst_6 = arith.constant 2.500000e-01 : f32
    %7 = vector.broadcast %cst_6 : f32 to vector<8x8xf32>
    %8 = arith.mulf %6, %7 : vector<8x8xf32>
    %c0_7 = arith.constant 0 : index
    %c0_8 = arith.constant 0 : index
    %c0_9 = arith.constant 0 : index
    %9 = vector.load %arg4[%c0_7, %c0_8, %c0_9] : memref<1x8x8xf32, #tpu.memory_space<vmem>>, vector<1x8x8xf32>
    %10 = vector.shape_cast %9 : vector<1x8x8xf32> to vector<8x8xf32>
    %11 = vector.shape_cast %8 : vector<8x8xf32> to vector<1x8x8xf32>
    tpu.vector_store %arg4[%c0_7, %c0_8, %c0_9], %11 {strides = array<i32>} : memref<1x8x8xf32, #tpu.memory_space<vmem>>, vector<1x8x8xf32>,
    return
  }
  func.func @transform_0(%arg0: i32, %arg1: i32) -> (i32, i32, i32) {
    %c0_i32 = arith.constant 0 : i32
    %c0_i32_0 = arith.constant 0 : i32
    return %arg0, %arg1, %c0_i32 : i32, i32, i32
  }
  func.func @transform_1(%arg0: i32, %arg1: i32) -> (i32, i32) {
    %c0_i32 = arith.constant 0 : i32
    %c0_i32_0 = arith.constant 0 : i32
    %c0_i32_1 = arith.constant 0 : i32
    return %c0_i32, %c0_i32_0 : i32, i32
  }
  func.func @transform_2(%arg0: i32, %arg1: i32) -> (i32, i32, i32) {
    %c0_i32 = arith.constant 0 : i32
    %c0_i32_0 = arith.constant 0 : i32
    return %arg0, %arg1, %c0_i32 : i32, i32, i32
  }
}

</mosaic_0001>

<llo_original>
// kernel: downsample_ex_forward.1
$region0: #{downsample_ex_forward.1}
  #allocation0 [shape = 'u32[]', space=smem, size = 0x4, offset = 0x4, fixed_abs, tag = 'smem constant byte address 0x4 - core index']
  #allocation1 [shape = 'u32[72,128]{1,0:T(1,128)}', space=vmem, size = 0x9000, scoped, tag = 'internal scratch']
  %s0 = inlined_call_operand.vmem [shape: f32[8,8,32], index: 0, kind: input, shape index: {}]
  %s1 = inlined_call_operand.vmem [shape: f32[16,8], index: 1, kind: input, shape index: {}]
  %s2 = inlined_call_operand.hbm [shape: f32[8,8,8], index: 2, kind: output, shape index: {}]
  %s3 = sld [smem:[#allocation0]]
  $region41: #{downsample_ex_forward.1} parent=0
    _
  %s5 = ssub.s32 1, %s3
  %s6 = scalar_select 0, %s5, %s3
  $region1: #{downsample_ex_forward.1} parent=0
    #allocation2 [shape = 'u8[8192]{0}', space=vmem, size = 0x2000, scoped, tag = 'output window, operand 0']
    #allocation3 [shape = 's32[2]{0}', space=sflag, size = 0x8, scoped, tag = 'scoped memory for downsample_ex_forward.1']
    %7 = vsyncpa [#allocation3], 0
    %s8 = scalar_lea.sflag [#allocation3], 1
    %9 = vsyncpa %s8, 0
    loop: start=0, step=1, limit=10
    $region2: #{downsample_ex_forward.1} parent=1 // loop_pre_header
      _
    $region3: #{downsample_ex_forward.1} parent=1 // loop_header
      %s11 = sphi 0, %s15
      %p12 = scmp.ge.s32.totalorder %s11, 10
      %s18 = sphi 0, %s30
      %s19 = sphi 0, %s26
      %s20 = sphi 0, %s18
      %s21 = sphi 0, %s19
      %s22 = sphi 0, %s20
      %s23 = sphi 0, %s21
      %s35 = sphi 0, %s37
      %s38 = sphi 0, %s35
      %s39 = sphi 0, %s38
      %s55 = sphi 0, %s39
      %s59 = sphi 0, %s59
      %s61 = sphi 0, %s59
      %s62 = sphi 0, %s61
      %s76 = sphi 0, %s62
      %s84 = sphi 0, %s86
      %s87 = sphi 0, %s84
      %s88 = sphi 0, %s87
      %s104 = sphi 0, %s88
    $region4: #{downsample_ex_forward.1} parent=1 // loop_header_branch
      %14 = sbr.rel (%p12) target = $region8
    $region5: #{downsample_ex_forward.1} parent=1 // loop_body
      %s16 = ssub.s32 %s11, 1
      %s17 = ssub.s32 %s11, 2
      %s24 = sadd.s32 1, %s19
      %p25 = scmp.ge.s32.totalorder %s24, 1
      %s26 = scalar_select %p25, 0, %s24
      %s27 = sadd.s32 1, %s18
      %s28 = scalar_select %p25, %s27, %s18
      %p29 = scmp.ge.s32.totalorder %s28, 8
      %s30 = scalar_select %p29, 0, %s28
      %s31 = ssub.s32 %s18, %s30
      %s32 = ssub.s32 %s19, %s26
      %s33 = sor.u32 %s31, %s32
      %p34 = scmp.eq.s32.totalorder %s33, 0
      %s36 = sadd.s32 %s35, 1
      %s37 = scalar_select %p34, %s35, %s36
      %p40 = pneg %p34
      %p41 = scmp.eq.s32.totalorder %s11, 7
      %p42 = por %p40, %p41
      %p43 = scmp.ne.s32.totalorder %s35, %s38
      %p44 = scmp.eq.s32.totalorder %s11, 0
      %p45 = por %p43, %p44
      %p46 = scmp.ne.s32.totalorder %s35, %s38
      %p47 = scmp.eq.s32.totalorder %s16, 7
      %p48 = por %p46, %p47
      %p49 = scmp.ne.s32.totalorder %s38, %s39
      %p50 = scmp.eq.s32.totalorder %s16, 0
      %p51 = por %p49, %p50
      %p52 = scmp.ne.s32.totalorder %s38, %s39
      %p53 = scmp.eq.s32.totalorder %s17, 7
      %p54 = por %p52, %p53
      %p56 = scmp.ne.s32.totalorder %s39, %s55
      %p57 = scmp.eq.s32.totalorder %s17, 0
      %p58 = por %p56, %p57
      %s60 = sadd.s32 %s59, 1
      %p63 = scmp.eq.s32.totalorder %s11, 7
      %p64 = scmp.ne.s32.totalorder %s59, %s61
      %p65 = scmp.eq.s32.totalorder %s11, 0
      %p66 = por %p64, %p65
      %p67 = scmp.ne.s32.totalorder %s59, %s61
      %p68 = scmp.eq.s32.totalorder %s16, 7
      %p69 = por %p67, %p68
      %p70 = scmp.ne.s32.totalorder %s61, %s62
      %p71 = scmp.eq.s32.totalorder %s16, 0
      %p72 = por %p70, %p71
      %p73 = scmp.ne.s32.totalorder %s61, %s62
      %p74 = scmp.eq.s32.totalorder %s17, 7
      %p75 = por %p73, %p74
      %p77 = scmp.ne.s32.totalorder %s62, %s76
      %p78 = scmp.eq.s32.totalorder %s17, 0
      %p79 = por %p77, %p78
      %s80 = ssub.s32 %s18, %s30
      %s81 = ssub.s32 %s19, %s26
      %s82 = sor.u32 %s80, %s81
      %p83 = scmp.eq.s32.totalorder %s82, 0
      %s85 = sadd.s32 %s84, 1
      %s86 = scalar_select %p83, %s84, %s85
      %p89 = pneg %p83
      %p90 = scmp.eq.s32.totalorder %s11, 7
      %p91 = por %p89, %p90
      %p92 = scmp.ne.s32.totalorder %s84, %s87
      %p93 = scmp.eq.s32.totalorder %s11, 0
      %p94 = por %p92, %p93
      %p95 = scmp.ne.s32.totalorder %s84, %s87
      %p96 = scmp.eq.s32.totalorder %s16, 7
      %p97 = por %p95, %p96
      %p98 = scmp.ne.s32.totalorder %s87, %s88
      %p99 = scmp.eq.s32.totalorder %s16, 0
      %p100 = por %p98, %p99
      %p101 = scmp.ne.s32.totalorder %s87, %s88
      %p102 = scmp.eq.s32.totalorder %s17, 7
      %p103 = por %p101, %p102
      %p105 = scmp.ne.s32.totalorder %s88, %s104
      %p106 = scmp.eq.s32.totalorder %s17, 0
      %p107 = por %p105, %p106
      %p108 = scmp.le.s32.totalorder 1, %s11
      %p109 = scmp.lt.s32.totalorder %s11, 9
      %p110 = pnand %p108, %p109
      %p111 = pneg %p110
      // Predicated region
      $region9: #{downsample_ex_forward.1} parent=5 // pred_check
        _
      $region10: #{downsample_ex_forward.1} parent=5 // pred_check_branch
        %113 = sbr.rel (%p110) target = $region12
      $region11: #{downsample_ex_forward.1} parent=5 // pred_region
        %s114 = ssub.s32 %s11, 1
        // Predicated region
        $region13: #{downsample_ex_forward.1} parent=11 // pred_check
          %p115 = pneg %p72
        $region14: #{downsample_ex_forward.1} parent=11 // pred_check_branch
          %117 = sbr.rel (%p115) target = $region16
        $region15: #{downsample_ex_forward.1} parent=11 // pred_region
          _
        $region16: #{downsample_ex_forward.1} parent=11 // pred_fallthru
          _
      $region12: #{downsample_ex_forward.1} parent=5 // pred_fallthru
        _
      %p118 = scmp.lt.s32.totalorder %s11, 8
      // Predicated region
      $region17: #{downsample_ex_forward.1} parent=5 // pred_check
        %p119 = pneg %p118
      $region18: #{downsample_ex_forward.1} parent=5 // pred_check_branch
        %121 = sbr.rel (%p119) target = $region20
      $region19: #{downsample_ex_forward.1} parent=5 // pred_region
        // Predicated region
        $region21: #{downsample_ex_forward.1} parent=19 // pred_check
          %p122 = pneg %p45
        $region22: #{downsample_ex_forward.1} parent=19 // pred_check_branch
          %124 = sbr.rel (%p122) target = $region24
        $region23: #{downsample_ex_forward.1} parent=19 // pred_region
          %p125 = scmp.lt.s32.totalorder %s18, 7
          %s126 = scalar_select %p125, %s18, 7
          %p127 = scmp.lt.s32.totalorder %s19, 0
          %s128 = scalar_select %p127, %s19, 0
          %s129 = sadd.s32 %s128, %s126
          %s130 = smul.addr %s129, 8
          %s131 = scalar_lea.vmem %s0, %s130
        $region24: #{downsample_ex_forward.1} parent=19 // pred_fallthru
          _
      $region20: #{downsample_ex_forward.1} parent=5 // pred_fallthru
        _
      %p132 = scmp.le.s32.totalorder 1, %s11
      %p133 = scmp.lt.s32.totalorder %s11, 9
      %p134 = pnand %p132, %p133
      %p135 = pneg %p134
      // Predicated region
      $region25: #{downsample_ex_forward.1} parent=5 // pred_check
        _
      $region26: #{downsample_ex_forward.1} parent=5 // pred_check_branch
        %137 = sbr.rel (%p134) target = $region28
      $region27: #{downsample_ex_forward.1} parent=5 // pred_region
        %s138 = ssub.s32 %s11, 1
        %p139 = scmp.lt.s32.totalorder %s20, 7
        %s140 = scalar_select %p139, %s20, 7
        %p141 = scmp.lt.s32.totalorder %s21, 0
        %s142 = scalar_select %p141, %s21, 0
        %s143 = sadd.s32 %s142, %s140
        %s144 = smul.addr %s143, 8
        %s145 = scalar_lea.vmem %s0, %s144
        %p146 = pneg %p51
        %p147 = pneg %p48
        %p148 = pneg %p72
        %p149 = pneg %p69
        %p150 = pneg %p100
        %p151 = pneg %p97
        %s152 = sand.u32 %s87, 1
        %s153 = scalar_lea.sflag [#allocation3], %s152
        %s154 = sand.u32 %s87, 1
        %s155 = smul.addr %s154, 8
        %s156 = scalar_lea.vmem [#allocation2], %s155
        %p157 = scmp.lt.s32.totalorder %s20, 7
        %s158 = scalar_select %p157, %s20, 7
        %p159 = scmp.lt.s32.totalorder %s21, 0
        %s160 = scalar_select %p159, %s21, 0
        %s161 = sadd.s32 %s160, %s158
        %s162 = smul.addr %s161, 8
        %s163 = scalar_lea.vmem %s0, %s162
        %v164 = vld [vmem:[%s163] sm:$0xff]
        %166 = vrot.lane.b32.xlu0 %v164, 112
        %v167 = vpop.permute.xlu0 %166
        %v169 = vadd.f32 %v164, %v167
        %v170 = vld [vmem:[%s1] sm:$0xff]
        %v171 = vld [vmem:[%s1 + $0x8] sm:$0xff]
        %vm172 = vcmask 130048
        %v174 = vsel %vm172, %v169, 0
        %176 = vmatpush.msra.mxu0 0.0
        %177 = vmatpush.msra.mxu0 0.0
        %178 = vmatpush.msra.mxu0 0.0
        %179 = vmatpush.msra.mxu0 0.0
        %180 = vmatpush.msra.mxu0 0.0
        %181 = vmatpush.msra.mxu0 0.0
        %182 = vmatpush.msra.mxu0 0.0
        %183 = vmatpush.msra.mxu0 0.0
        %184 = vmatpush.msra.mxu0 0.0
        %185 = vmatpush.msra.mxu0 0.0
        %186 = vmatpush.msra.mxu0 0.0
        %187 = vmatpush.msra.mxu0 0.0
        %188 = vmatpush.msra.mxu0 0.0
        %189 = vmatpush.msra.mxu0 0.0
        %190 = vmatpush.msra.mxu0 %v171
        %191 = vmatpush.msra.mxu0 %v170
        %192 = vmatmul.f32.gmra.mxu0 %v174
        %v193 = vpop.f32.mrf.mxu0
        %v194 = vadd.f32 0.0, %v193
        %195 = vdwg.mxu0
        %v196 = vmul.f32 %v194, 0.25
        %vm197 = vcmask 64512
        %198 = vst.msk [vmem:[%s156] sm:$0xff] %vm197, %v196
        %s199 = sand.u32 %s87, 1
        %s200 = scalar_lea.sflag [#allocation3], %s199
        %s201 = sand.u32 %s87, 1
        %s202 = smul.addr %s201, 8
        %s203 = scalar_lea.vmem [#allocation2], %s202
        // Predicated region
        $region29: #{downsample_ex_forward.1} parent=27 // pred_check
          %p204 = pneg %p97
        $region30: #{downsample_ex_forward.1} parent=27 // pred_check_branch
          %206 = sbr.rel (%p204) target = $region32
        $region31: #{downsample_ex_forward.1} parent=27 // pred_region
          %208 = vsyncadd %s200, 0
          %s209 = sadd.s32 %s21, %s20
          %s210 = smul.addr %s209, 8
          %s211 = scalar_lea.hbm %s2, %s210
          %s213 = sshll.u32 %s203, 4
          %s214 = int_to_ptr.vmem [resolvable:$true] %s213
          %s215 = sshll.u32 %s211, 4
          %s216 = int_to_ptr.hbm [resolvable:$true] %s215
          %218 = dma.vmem_to_hbm [thread:$0]  %s214, 128, %s216, %s200
        $region32: #{downsample_ex_forward.1} parent=27 // pred_fallthru
          _
      $region28: #{downsample_ex_forward.1} parent=5 // pred_fallthru
        _
      %p219 = scmp.le.s32.totalorder 2, %s11
      // Predicated region
      $region33: #{downsample_ex_forward.1} parent=5 // pred_check
        %p220 = pneg %p219
      $region34: #{downsample_ex_forward.1} parent=5 // pred_check_branch
        %222 = sbr.rel (%p220) target = $region36
      $region35: #{downsample_ex_forward.1} parent=5 // pred_region
        %s223 = ssub.s32 %s11, 2
        // Predicated region
        $region37: #{downsample_ex_forward.1} parent=35 // pred_check
          %p224 = pneg %p103
        $region38: #{downsample_ex_forward.1} parent=35 // pred_check_branch
          %226 = sbr.rel (%p224) target = $region40
        $region39: #{downsample_ex_forward.1} parent=35 // pred_region
          %s227 = sand.u32 %s88, 1
          %s228 = scalar_lea.sflag [#allocation3], %s227
          %s229 = sand.u32 %s88, 1
          %s230 = smul.addr %s229, 8
          %s231 = scalar_lea.vmem [#allocation2], %s230
          %233 = dma.done %s228, 128
        $region40: #{downsample_ex_forward.1} parent=35 // pred_fallthru
          _
      $region36: #{downsample_ex_forward.1} parent=5 // pred_fallthru
        _
    $region6: #{downsample_ex_forward.1} parent=1 // loop_footer
      %s15 = sadd.s32 1, %s11
    $region7: #{downsample_ex_forward.1} parent=1 // loop_footer_branch
      %10 = sbr.rel target = $region3
    $region8: #{downsample_ex_forward.1} parent=1 // loop_exit
      _
    %234 = vsyncpa [#allocation3], 1
    %s235 = scalar_lea.sflag [#allocation3], 1
    %236 = vsyncpa %s235, 1

</llo_original>
